<compile_context>
chip_gen: v7x
topology: tpu7x:2x2x1
jax: 0.10.0
libtpu: 0.0.40
codegen_flags: <defaults>
</compile_context>

<pallas_src>
import functools

import jax
import jax.numpy as jnp
from jax.experimental import pallas as pl
from jax.experimental.pallas import tpu as pltpu


_MIN_VMEM_LIMIT = 32 * 1024 * 1024
_TARGET_BLOCK_BYTES = 2 * 1024 * 1024   # per input block, per pipeline buffer
_MAX_TILE_COLS = 2048                   # feature-tile lanes (multiple of 128)


def _round_up(x, m):
    return ((x + m - 1) // m) * m


def _sublane(dtype):
    # Sub-32-bit dtypes pack along sublanes: f32 -> 8 rows, bf16 -> 16, int8 -> 32.
    return max(8, 32 // jnp.dtype(dtype).itemsize)


def _vmem_capacity_bytes():
    try:
        return int(pltpu.get_tpu_info().vmem_capacity_bytes)
    except Exception:
        return 64 * 1024 * 1024  # v7x per-TC VMEM: conservative everywhere


def _num_tensorcores():
    try:
        kind = jax.devices()[0].device_kind.lower()
    except Exception:
        return 1
    return 2 if "v7" in kind else 1  # v5e/v6e: 1 TC per chip


def _footprint_bytes(tb, td, itemsize):
    ins = 3 * 2 * tb * td * itemsize   # 3 inputs x 2 pipeline buffers
    tmp = 4 * tb * td * 4              # f32 d_ap/d_an/squares (worst case, materialized)
    scratch = 2 * tb * 128 * 4         # (TB, 1) f32 accumulators, lane-padded
    out = 2 * 128 * 4
    return ins + tmp + scratch + out


def _choose_tiles(B, D, dtype, tile_rows, tile_cols):
    itemsize = jnp.dtype(dtype).itemsize
    sub = _sublane(dtype)
    vmem_cap = _vmem_capacity_bytes()
    budget = vmem_cap // 2
    auto_rows = tile_rows is None

    # Feature tile: full D if it fits one lane-dense block, else 2048-lane slices.
    if tile_cols is None:
        tile_cols = D if D <= _MAX_TILE_COLS else _MAX_TILE_COLS

    # Batch tile: ~_TARGET_BLOCK_BYTES per input block, sublane-rounded.
    if auto_rows:
        tile_rows = max(sub, _TARGET_BLOCK_BYTES // max(1, tile_cols * itemsize))
    tile_rows = _round_up(max(tile_rows, sub), sub)
    tile_rows = min(tile_rows, _round_up(B, sub))

    if auto_rows:
        # v7x: ensure the "parallel" batch axis has >= 2 tiles so both
        # TensorCores get work. No-op on v5e/v6e (single TC).
        cores = _num_tensorcores()
        if cores > 1 and B > sub:
            tile_rows = min(tile_rows, _round_up(pl.cdiv(B, cores), sub))
        tile_rows = max(tile_rows, sub)
        # Shrink until the double-buffered working set fits the per-generation
        # VMEM budget (matters mostly on v7x's 64 MiB).
        while tile_rows > sub and _footprint_bytes(tile_rows, tile_cols, itemsize) > budget:
            tile_rows = max(sub, _round_up(tile_rows // 2, sub))

    footprint = _footprint_bytes(tile_rows, tile_cols, itemsize)
    vmem_limit = int(min(vmem_cap * 7 // 8,
                         max(_MIN_VMEM_LIMIT, footprint + footprint // 4 + (4 << 20))))
    return tile_rows, tile_cols, vmem_limit


def _triplet_loss_kernel(a_ref, p_ref, n_ref, o_ref, ss_ap_ref, ss_an_ref,
                         *, margin, batch, feat, tile_rows, tile_cols):
    i = pl.program_id(0)          # batch tile ("parallel")
    k = pl.program_id(1)          # feature tile ("arbitrary", reduction, last)

    @pl.when(k == 0)
    def _init():
        ss_ap_ref[...] = jnp.zeros_like(ss_ap_ref)
        ss_an_ref[...] = jnp.zeros_like(ss_an_ref)

    # Upcast before differencing/squaring: free (HBM-bound), needed on v5e
    # (no bf16 VPU) and avoids bf16 rounding of the squares.
    a = a_ref[...].astype(jnp.float32)
    p = p_ref[...].astype(jnp.float32)
    n = n_ref[...].astype(jnp.float32)
    d_ap = a - p
    d_an = a - n

    if feat % tile_cols != 0:
        # Static: only ragged-D inputs pay for the lane mask (padded lanes of
        # the last feature tile contain unspecified data).
        lane = jax.lax.broadcasted_iota(jnp.int32, (tile_rows, tile_cols), 1)
        valid_lane = (k * tile_cols + lane) < feat
        d_ap = jnp.where(valid_lane, d_ap, jnp.float32(0.0))
        d_an = jnp.where(valid_lane, d_an, jnp.float32(0.0))

    # Per-row partial sums of squares for this feature slice (XLU lane-reduce).
    ss_ap_ref[...] += jnp.sum(d_ap * d_ap, axis=1, keepdims=True)
    ss_an_ref[...] += jnp.sum(d_an * d_an, axis=1, keepdims=True)

    @pl.when(k == pl.num_programs(1) - 1)
    def _epilogue():
        dp = jnp.sqrt(ss_ap_ref[...])
        dn = jnp.sqrt(ss_an_ref[...])
        losses = jnp.maximum(dp - dn + jnp.float32(margin), jnp.float32(0.0))  # (TB, 1)
        if batch % tile_rows != 0:
            # Static: ragged-B only; runs on the tiny (TB, 1) epilogue vector.
            row = jax.lax.broadcasted_iota(jnp.int32, (tile_rows, 1), 0)
            losses = jnp.where(i * tile_rows + row < batch, losses, jnp.float32(0.0))
        # Lane-dense unmasked (1, 128) store of this batch tile's partial sum.
        o_ref[...] = jnp.broadcast_to(jnp.sum(losses), (1, 128))


def triplet_loss(anchor, positive, negative, margin, *, tile_rows=None, tile_cols=None):
    """Pallas TPU implementation of TripletLoss.forward (sum reduction).

    anchor/positive/negative: (B, D) arrays. Returns a scalar f32.
    """
    B, D = anchor.shape
    assert positive.shape == (B, D) and negative.shape == (B, D)

    tb, td, vmem_limit = _choose_tiles(B, D, anchor.dtype, tile_rows, tile_cols)
    num_b = pl.cdiv(B, tb)
    num_d = pl.cdiv(D, td)

    kernel = functools.partial(
        _triplet_loss_kernel,
        margin=float(margin), batch=B, feat=D, tile_rows=tb, tile_cols=td)

    partials = pl.pallas_call(
        kernel,
        out_shape=jax.ShapeDtypeStruct((num_b, 128), jnp.float32),
        grid=(num_b, num_d),
        in_specs=[
            pl.BlockSpec((tb, td), lambda i, k: (i, k)),
            pl.BlockSpec((tb, td), lambda i, k: (i, k)),
            pl.BlockSpec((tb, td), lambda i, k: (i, k)),
        ],
        out_specs=pl.BlockSpec((1, 128), lambda i, k: (i, 0)),
        scratch_shapes=[
            pltpu.VMEM((tb, 1), jnp.float32),   # sum((a-p)^2) per row
            pltpu.VMEM((tb, 1), jnp.float32),   # sum((a-n)^2) per row
        ],
        compiler_params=pltpu.CompilerParams(
            dimension_semantics=("parallel", "arbitrary"),
            vmem_limit_bytes=vmem_limit,
        ),
    )(anchor, positive, negative)

    # Tiny final reduction over per-batch-tile partials (lane 0 of each row).
    return jnp.sum(partials[:, 0])


def triplet_loss_ref(anchor, positive, negative, margin):
    """Pure-JAX reference mirroring the PyTorch module."""
    a = anchor.astype(jnp.float32)
    p = positive.astype(jnp.float32)
    n = negative.astype(jnp.float32)
    dp = jnp.linalg.norm(a - p, axis=1)
    dn = jnp.linalg.norm(a - n, axis=1)
    return jnp.sum(jnp.maximum(dp - dn + margin, 0.0))


if __name__ == "__main__":
    key = jax.random.PRNGKey(0)
    k1, k2, k3 = jax.random.split(key, 3)
    margin = 0.5  # TripletLoss(margin=0.5)

    # Case 1: small (N, C) embedding batch, auto (byte-based) tiling path.
    B, D = 20, 32
    anchor = jax.random.normal(k1, (B, D), dtype=jnp.float32)
    positive = jax.random.normal(k2, (B, D), dtype=jnp.float32)
    negative = jax.random.normal(k3, (B, D), dtype=jnp.float32)
    ref = triplet_loss_ref(anchor, positive, negative, margin)
    out = jax.block_until_ready(triplet_loss(anchor, positive, negative, margin))
    assert jnp.allclose(out, ref, rtol=1e-5, atol=1e-5), (out, ref)

    # Case 2: exercise the full 2-D grid — multiple batch tiles with a ragged
    # remainder (20 % 8) and multiple feature tiles with a ragged remainder
    # (160 % 128), i.e. both masks and the scratch-accumulator epilogue.
    B2, D2 = 20, 160
    a2 = jax.random.normal(k1, (B2, D2), dtype=jnp.float32)
    p2 = jax.random.normal(k2, (B2, D2), dtype=jnp.float32)
    n2 = jax.random.normal(k3, (B2, D2), dtype=jnp.float32)
    ref2 = triplet_loss_ref(a2, p2, n2, margin)
    out2 = jax.block_until_ready(
        triplet_loss(a2, p2, n2, margin, tile_rows=8, tile_cols=128))
    assert jnp.allclose(out2, ref2, rtol=1e-4, atol=1e-4), (out2, ref2)

    # Case 3: bf16 inputs — exercises the 16-row sublane rounding and the
    # f32 upcast-before-square path.
    a3 = anchor.astype(jnp.bfloat16)
    p3 = positive.astype(jnp.bfloat16)
    n3 = negative.astype(jnp.bfloat16)
    ref3 = triplet_loss_ref(a3, p3, n3, margin)
    out3 = jax.block_until_ready(triplet_loss(a3, p3, n3, margin))
    assert jnp.allclose(out3, ref3, rtol=1e-3, atol=1e-3), (out3, ref3)

    print("KERNEL_OK")
</pallas_src>

<mosaic_0001>
module attributes {stable_mosaic.version = 11 : i64} {
  func.func @_triplet_loss_kernel(%arg0: i32, %arg1: i32, %arg2: memref<24x32xf32, #tpu.memory_space<vmem>>, %arg3: memref<24x32xf32, #tpu.memory_space<vmem>>, %arg4: memref<24x32xf32, #tpu.memory_space<vmem>>, %arg5: memref<1x128xf32, #tpu.memory_space<vmem>>, %arg6: memref<24x1xf32, #tpu.memory_space<vmem>>, %arg7: memref<24x1xf32, #tpu.memory_space<vmem>>) attributes {dimension_semantics = [#tpu.dimension_semantics<parallel>, #tpu.dimension_semantics<arbitrary>], iteration_bounds = array<i64: 1, 1>, scalar_prefetch = 0 : i64, scratch_operands = 2 : i64, tpu.core_type = #tpu.core_type<tc>, window_params = [{transform_indices = @transform_0, window_bounds = array<i64: 24, 32>}, {transform_indices = @transform_1, window_bounds = array<i64: 24, 32>}, {transform_indices = @transform_2, window_bounds = array<i64: 24, 32>}, {transform_indices = @transform_3, window_bounds = array<i64: 1, 128>}]} {
    %c0_i32 = arith.constant 0 : i32
    %0 = arith.cmpi eq, %arg1, %c0_i32 : i32
    %1 = arith.extui %0 : i1 to i32
    %c0_i32_0 = arith.constant 0 : i32
    %2 = arith.cmpi ne, %1, %c0_i32_0 : i32
    scf.if %2 {
      %cst_17 = arith.constant 0.000000e+00 : f32
      %23 = vector.broadcast %cst_17 : f32 to vector<24x1xf32>
      %c0_18 = arith.constant 0 : index
      %c0_19 = arith.constant 0 : index
      %24 = vector.load %arg6[%c0_18, %c0_19] : memref<24x1xf32, #tpu.memory_space<vmem>>, vector<24x1xf32>
      tpu.vector_store %arg6[%c0_18, %c0_19], %23 {strides = array<i32>} : memref<24x1xf32, #tpu.memory_space<vmem>>, vector<24x1xf32>,
      %cst_20 = arith.constant 0.000000e+00 : f32
      %25 = vector.broadcast %cst_20 : f32 to vector<24x1xf32>
      %c0_21 = arith.constant 0 : index
      %c0_22 = arith.constant 0 : index
      %26 = vector.load %arg7[%c0_21, %c0_22] : memref<24x1xf32, #tpu.memory_space<vmem>>, vector<24x1xf32>
      tpu.vector_store %arg7[%c0_21, %c0_22], %25 {strides = array<i32>} : memref<24x1xf32, #tpu.memory_space<vmem>>, vector<24x1xf32>,
    } else {
    }
    %c0 = arith.constant 0 : index
    %c0_1 = arith.constant 0 : index
    %3 = vector.load %arg2[%c0, %c0_1] : memref<24x32xf32, #tpu.memory_space<vmem>>, vector<24x32xf32>
    %c0_2 = arith.constant 0 : index
    %c0_3 = arith.constant 0 : index
    %4 = vector.load %arg3[%c0_2, %c0_3] : memref<24x32xf32, #tpu.memory_space<vmem>>, vector<24x32xf32>
    %c0_4 = arith.constant 0 : index
    %c0_5 = arith.constant 0 : index
    %5 = vector.load %arg4[%c0_4, %c0_5] : memref<24x32xf32, #tpu.memory_space<vmem>>, vector<24x32xf32>
    %6 = arith.subf %3, %4 : vector<24x32xf32>
    %7 = arith.subf %3, %5 : vector<24x32xf32>
    %c0_6 = arith.constant 0 : index
    %c0_7 = arith.constant 0 : index
    %8 = vector.load %arg6[%c0_6, %c0_7] : memref<24x1xf32, #tpu.memory_space<vmem>>, vector<24x1xf32>
    %9 = arith.mulf %6, %6 : vector<24x32xf32>
    %cst = arith.constant dense<0.000000e+00> : vector<24xf32>
    %10 = vector.multi_reduction <add>, %9, %cst [1] : vector<24x32xf32> to vector<24xf32>
    %11 = vector.shape_cast %10 : vector<24xf32> to vector<24x1xf32>
    %12 = arith.addf %8, %11 : vector<24x1xf32>
    %c0_8 = arith.constant 0 : index
    %c0_9 = arith.constant 0 : index
    %13 = vector.load %arg6[%c0_8, %c0_9] : memref<24x1xf32, #tpu.memory_space<vmem>>, vector<24x1xf32>
    tpu.vector_store %arg6[%c0_8, %c0_9], %12 {strides = array<i32>} : memref<24x1xf32, #tpu.memory_space<vmem>>, vector<24x1xf32>,
    %c0_10 = arith.constant 0 : index
    %c0_11 = arith.constant 0 : index
    %14 = vector.load %arg7[%c0_10, %c0_11] : memref<24x1xf32, #tpu.memory_space<vmem>>, vector<24x1xf32>
    %15 = arith.mulf %7, %7 : vector<24x32xf32>
    %cst_12 = arith.constant dense<0.000000e+00> : vector<24xf32>
    %16 = vector.multi_reduction <add>, %15, %cst_12 [1] : vector<24x32xf32> to vector<24xf32>
    %17 = vector.shape_cast %16 : vector<24xf32> to vector<24x1xf32>
    %18 = arith.addf %14, %17 : vector<24x1xf32>
    %c0_13 = arith.constant 0 : index
    %c0_14 = arith.constant 0 : index
    %19 = vector.load %arg7[%c0_13, %c0_14] : memref<24x1xf32, #tpu.memory_space<vmem>>, vector<24x1xf32>
    tpu.vector_store %arg7[%c0_13, %c0_14], %18 {strides = array<i32>} : memref<24x1xf32, #tpu.memory_space<vmem>>, vector<24x1xf32>,
    %c0_i32_15 = arith.constant 0 : i32
    %20 = arith.cmpi eq, %arg1, %c0_i32_15 : i32
    %21 = arith.extui %20 : i1 to i32
    %c0_i32_16 = arith.constant 0 : i32
    %22 = arith.cmpi ne, %21, %c0_i32_16 : i32
    scf.if %22 {
      %c0_17 = arith.constant 0 : index
      %c0_18 = arith.constant 0 : index
      %23 = vector.load %arg6[%c0_17, %c0_18] : memref<24x1xf32, #tpu.memory_space<vmem>>, vector<24x1xf32>
      %24 = math.sqrt %23 : vector<24x1xf32>
      %c0_19 = arith.constant 0 : index
      %c0_20 = arith.constant 0 : index
      %25 = vector.load %arg7[%c0_19, %c0_20] : memref<24x1xf32, #tpu.memory_space<vmem>>, vector<24x1xf32>
      %26 = math.sqrt %25 : vector<24x1xf32>
      %27 = arith.subf %24, %26 : vector<24x1xf32>
      %cst_21 = arith.constant 5.000000e-01 : f32
      %28 = vector.broadcast %cst_21 : f32 to vector<24x1xf32>
      %29 = arith.addf %27, %28 : vector<24x1xf32>
      %cst_22 = arith.constant 0.000000e+00 : f32
      %30 = vector.broadcast %cst_22 : f32 to vector<24x1xf32>
      %31 = arith.maximumf %29, %30 : vector<24x1xf32>
      %32 = tpu.iota {dimensions = array<i32: 0>} : vector<24x1xi32>
      %c24_i32 = arith.constant 24 : i32
      %33 = arith.muli %arg0, %c24_i32 : i32
      %34 = vector.broadcast %33 : i32 to vector<24x1xi32>
      %35 = arith.addi %34, %32 : vector<24x1xi32>
      %c20_i32 = arith.constant 20 : i32
      %36 = vector.broadcast %c20_i32 : i32 to vector<24x1xi32>
      %37 = arith.cmpi slt, %35, %36 : vector<24x1xi32>
      %cst_23 = arith.constant 0.000000e+00 : f32
      %38 = vector.broadcast %cst_23 : f32 to vector<24x1xf32>
      %39 = arith.select %37, %31, %38 : vector<24x1xi1>, vector<24x1xf32>
      %40 = vector.shape_cast %39 : vector<24x1xf32> to vector<1x24x1xf32>
      %cst_24 = arith.constant dense<0.000000e+00> : vector<1xf32>
      %41 = vector.multi_reduction <add>, %40, %cst_24 [1, 2] : vector<1x24x1xf32> to vector<1xf32>
      %42 = vector.shape_cast %41 : vector<1xf32> to vector<1x1x1xf32>
      %43 = vector.extract %42[0, 0, 0] : f32 from vector<1x1x1xf32>
      %44 = vector.broadcast %43 : f32 to vector<1x128xf32>
      %c0_25 = arith.constant 0 : index
      %c0_26 = arith.constant 0 : index
      %45 = vector.load %arg5[%c0_25, %c0_26] : memref<1x128xf32, #tpu.memory_space<vmem>>, vector<1x128xf32>
      tpu.vector_store %arg5[%c0_25, %c0_26], %44 {strides = array<i32>} : memref<1x128xf32, #tpu.memory_space<vmem>>, vector<1x128xf32>,
    } else {
    }
    return
  }
  func.func @transform_0(%arg0: i32, %arg1: i32) -> (i32, i32) {
    %c0_i32 = arith.constant 0 : i32
    return %arg0, %arg1 : i32, i32
  }
  func.func @transform_1(%arg0: i32, %arg1: i32) -> (i32, i32) {
    %c0_i32 = arith.constant 0 : i32
    return %arg0, %arg1 : i32, i32
  }
  func.func @transform_2(%arg0: i32, %arg1: i32) -> (i32, i32) {
    %c0_i32 = arith.constant 0 : i32
    return %arg0, %arg1 : i32, i32
  }
  func.func @transform_3(%arg0: i32, %arg1: i32) -> (i32, i32) {
    %c0_i32 = arith.constant 0 : i32
    %c0_i32_0 = arith.constant 0 : i32
    return %arg0, %c0_i32 : i32, i32
  }
}

</mosaic_0001>

<llo_original>
// kernel: tpu_custom_call.1
$region0: #{tpu_custom_call.1}
  #allocation0 [shape = 'u32[]', space=smem, size = 0x4, offset = 0x4, fixed_abs, tag = 'smem constant byte address 0x4 - core index']
  #allocation1 [shape = 'u32[144,128]{1,0:T(1,128)}', space=vmem, size = 0x12000, scoped, tag = 'internal scratch']
  #allocation2 [shape = 'f32[24,1]{1,0:T(8,128)}', space=vmem, size = 0x3000, scoped, tag = 'scratch operand']
  #allocation3 [shape = 'f32[24,1]{1,0:T(8,128)}', space=vmem, size = 0x3000, scoped, tag = 'scratch operand']
  %s0 = inlined_call_operand.hbm [shape: f32[20,32], index: 0, kind: input, shape index: {}]
  %s1 = inlined_call_operand.hbm [shape: f32[20,32], index: 1, kind: input, shape index: {}]
  %s2 = inlined_call_operand.hbm [shape: f32[20,32], index: 2, kind: input, shape index: {}]
  %s3 = inlined_call_operand.hbm [shape: f32[1,128], index: 3, kind: output, shape index: {}]
  %s4 = sld [smem:[#allocation0]]
  $region42: #{tpu_custom_call.1} parent=0
    _
  %s6 = ssub.s32 1, %s4
  %s7 = scalar_select 0, %s6, %s4
  $region1: #{tpu_custom_call.1} parent=0
    #allocation4 [shape = 'u8[12288]{0}', space=vmem, size = 0x3000, scoped, tag = 'input window, operand 0, single buffered']
    #allocation5 [shape = 's32[1]{0}', space=sflag, size = 0x4, scoped, tag = 'scoped memory for tpu_custom_call.1']
    #allocation6 [shape = 's32[1]{0}', space=sflag, size = 0x4, scoped, tag = 'scoped memory for tpu_custom_call.1']
    #allocation7 [shape = 'u8[12288]{0}', space=vmem, size = 0x3000, scoped, tag = 'input window, operand 1, single buffered']
    #allocation8 [shape = 's32[1]{0}', space=sflag, size = 0x4, scoped, tag = 'scoped memory for tpu_custom_call.1']
    #allocation9 [shape = 'u8[12288]{0}', space=vmem, size = 0x3000, scoped, tag = 'input window, operand 2, single buffered']
    #allocation10 [shape = 'u8[512]{0}', space=vmem, size = 0x400, scoped, tag = 'output window, operand 0, single buffered']
    %8 = vsyncpa [#allocation5], 0
    %9 = vsyncpa [#allocation8], 0
    %10 = vsyncpa [#allocation6], 0
    // Predicated region
    $region2: #{tpu_custom_call.1} parent=1 // pred_check
      _
    $region3: #{tpu_custom_call.1} parent=1 // pred_check_branch
      %12 = sbr.rel (0) target = $region5
    $region4: #{tpu_custom_call.1} parent=1 // pred_region
      %s14 = ssub.s32 384, 384
      %15 = vsyncadd [#allocation5], %s14
      %s16 = sshll.u32 [#allocation4], 4
      %s17 = int_to_ptr.vmem [resolvable:$true] %s16
      %22 = dma.hbm_to_vmem [thread:$0]  %s0, 384, %s17, [#allocation5], 128, 128, 8
    $region5: #{tpu_custom_call.1} parent=1 // pred_fallthru
      _
    // Predicated region
    $region6: #{tpu_custom_call.1} parent=1 // pred_check
      _
    $region7: #{tpu_custom_call.1} parent=1 // pred_check_branch
      %24 = sbr.rel (0) target = $region9
    $region8: #{tpu_custom_call.1} parent=1 // pred_region
      %s26 = ssub.s32 384, 384
      %27 = vsyncadd [#allocation8], %s26
      %s28 = sshll.u32 [#allocation7], 4
      %s29 = int_to_ptr.vmem [resolvable:$true] %s28
      %34 = dma.hbm_to_vmem [thread:$0]  %s1, 384, %s29, [#allocation8], 128, 128, 8
    $region9: #{tpu_custom_call.1} parent=1 // pred_fallthru
      _
    // Predicated region
    $region10: #{tpu_custom_call.1} parent=1 // pred_check
      _
    $region11: #{tpu_custom_call.1} parent=1 // pred_check_branch
      %36 = sbr.rel (0) target = $region13
    $region12: #{tpu_custom_call.1} parent=1 // pred_region
      %s38 = ssub.s32 384, 384
      %39 = vsyncadd [#allocation8], %s38
      %s40 = sshll.u32 [#allocation9], 4
      %s41 = int_to_ptr.vmem [resolvable:$true] %s40
      %46 = dma.hbm_to_vmem [thread:$0]  %s2, 384, %s41, [#allocation8], 128, 128, 8
    $region13: #{tpu_custom_call.1} parent=1 // pred_fallthru
      _
    // Predicated region
    $region14: #{tpu_custom_call.1} parent=1 // pred_check
      _
    $region15: #{tpu_custom_call.1} parent=1 // pred_check_branch
      %48 = sbr.rel (0) target = $region17
    $region16: #{tpu_custom_call.1} parent=1 // pred_region
      %49 = dma.done [#allocation5], 384
    $region17: #{tpu_custom_call.1} parent=1 // pred_fallthru
      _
    // Predicated region
    $region18: #{tpu_custom_call.1} parent=1 // pred_check
      _
    $region19: #{tpu_custom_call.1} parent=1 // pred_check_branch
      %51 = sbr.rel (0) target = $region21
    $region20: #{tpu_custom_call.1} parent=1 // pred_region
      %52 = dma.done [#allocation8], 384
    $region21: #{tpu_custom_call.1} parent=1 // pred_fallthru
      _
    // Predicated region
    $region22: #{tpu_custom_call.1} parent=1 // pred_check
      _
    $region23: #{tpu_custom_call.1} parent=1 // pred_check_branch
      %54 = sbr.rel (0) target = $region25
    $region24: #{tpu_custom_call.1} parent=1 // pred_region
      %55 = dma.done [#allocation8], 384
    $region25: #{tpu_custom_call.1} parent=1 // pred_fallthru
      _
    %p56 = scmp.eq.s32.totalorder 0, 0
    // Predicated region
    $region26: #{tpu_custom_call.1} parent=1 // pred_check
      %p57 = pneg %p56
    $region27: #{tpu_custom_call.1} parent=1 // pred_check_branch
      %59 = sbr.rel (%p57) target = $region29
    $region28: #{tpu_custom_call.1} parent=1 // pred_region
      %vm60 = vcmask 7168
      %61 = vst.msk [vmem:[#allocation2] sm:$0xff] %vm60, 0.0
      %62 = vst.msk [vmem:[#allocation2 + $0x8] sm:$0xff] %vm60, 0.0
      %63 = vst.msk [vmem:[#allocation2 + $0x10] sm:$0xff] %vm60, 0.0
      %64 = vst.msk [vmem:[#allocation3] sm:$0xff] %vm60, 0.0
      %65 = vst.msk [vmem:[#allocation3 + $0x8] sm:$0xff] %vm60, 0.0
      %66 = vst.msk [vmem:[#allocation3 + $0x10] sm:$0xff] %vm60, 0.0
    $region29: #{tpu_custom_call.1} parent=1 // pred_fallthru
      _
    %v67 = vld [vmem:[#allocation4] sm:$0xff]
    %v68 = vld [vmem:[#allocation4 + $0x8] sm:$0xff]
    %v69 = vld [vmem:[#allocation4 + $0x10] sm:$0xff]
    %v70 = vld [vmem:[#allocation7] sm:$0xff]
    %v71 = vld [vmem:[#allocation7 + $0x8] sm:$0xff]
    %v72 = vld [vmem:[#allocation7 + $0x10] sm:$0xff]
    %v73 = vld [vmem:[#allocation9] sm:$0xff]
    %v74 = vld [vmem:[#allocation9 + $0x8] sm:$0xff]
    %v75 = vld [vmem:[#allocation9 + $0x10] sm:$0xff]
    %v76 = vsub.f32 %v67, %v70
    %v77 = vsub.f32 %v68, %v71
    %v78 = vsub.f32 %v69, %v72
    %v79 = vsub.f32 %v67, %v73
    %v80 = vsub.f32 %v68, %v74
    %v81 = vsub.f32 %v69, %v75
    %v82 = vld [vmem:[#allocation2] sm:$0xff]
    %v83 = vld [vmem:[#allocation2 + $0x8] sm:$0xff]
    %v84 = vld [vmem:[#allocation2 + $0x10] sm:$0xff]
    %v85 = vmul.f32 %v76, %v76
    %v86 = vmul.f32 %v77, %v77
    %v87 = vmul.f32 %v78, %v78
    %vm88 = vcmask 261120
    %v89 = vsel %vm88, %v85, 0.0
    %90 = vadd.xlane.f32.xlu0 %v89
    %v91 = vpop.xlane.xlu0 %90
    %v92 = vsel %vm88, %v86, 0.0
    %93 = vadd.xlane.f32.xlu0 %v92
    %v94 = vpop.xlane.xlu0 %93
    %v95 = vsel %vm88, %v87, 0.0
    %96 = vadd.xlane.f32.xlu0 %v95
    %v97 = vpop.xlane.xlu0 %96
    %v98 = vadd.f32 %v82, %v91
    %v99 = vadd.f32 %v83, %v94
    %v100 = vadd.f32 %v84, %v97
    %vm101 = vcmask 7168
    %102 = vst.msk [vmem:[#allocation2] sm:$0xff] %vm101, %v98
    %103 = vst.msk [vmem:[#allocation2 + $0x8] sm:$0xff] %vm101, %v99
    %104 = vst.msk [vmem:[#allocation2 + $0x10] sm:$0xff] %vm101, %v100
    %v105 = vld [vmem:[#allocation3] sm:$0xff]
    %v106 = vld [vmem:[#allocation3 + $0x8] sm:$0xff]
    %v107 = vld [vmem:[#allocation3 + $0x10] sm:$0xff]
    %v108 = vmul.f32 %v79, %v79
    %v109 = vmul.f32 %v80, %v80
    %v110 = vmul.f32 %v81, %v81
    %v111 = vsel %vm88, %v108, 0.0
    %112 = vadd.xlane.f32.xlu0 %v111
    %v113 = vpop.xlane.xlu0 %112
    %v114 = vsel %vm88, %v109, 0.0
    %115 = vadd.xlane.f32.xlu0 %v114
    %v116 = vpop.xlane.xlu0 %115
    %v117 = vsel %vm88, %v110, 0.0
    %118 = vadd.xlane.f32.xlu0 %v117
    %v119 = vpop.xlane.xlu0 %118
    %v120 = vadd.f32 %v105, %v113
    %v121 = vadd.f32 %v106, %v116
    %v122 = vadd.f32 %v107, %v119
    %123 = vst.msk [vmem:[#allocation3] sm:$0xff] %vm101, %v120
    %124 = vst.msk [vmem:[#allocation3 + $0x8] sm:$0xff] %vm101, %v121
    %125 = vst.msk [vmem:[#allocation3 + $0x10] sm:$0xff] %vm101, %v122
    // Predicated region
    $region30: #{tpu_custom_call.1} parent=1 // pred_check
      %p126 = pneg %p56
    $region31: #{tpu_custom_call.1} parent=1 // pred_check_branch
      %128 = sbr.rel (%p126) target = $region33
    $region32: #{tpu_custom_call.1} parent=1 // pred_region
      %v129 = vld [vmem:[#allocation2] sm:$0xff]
      %v130 = vld [vmem:[#allocation2 + $0x8] sm:$0xff]
      %v131 = vld [vmem:[#allocation2 + $0x10] sm:$0xff]
      %v132 = vrsqrt.pop %v129
      %v133 = vmul.f32 %v129, %v132
      %vm134 = vcmp.eq.f32.partialorder %v129, inf
      %v135 = vsel %vm134, %v129, %v133
      %vm136 = vcmp.eq.f32.partialorder %v129, 0.0
      %v137 = vand.u32 %v129, 2147483648
      %v138 = vsel %vm136, %v137, %v135
      %v139 = vrsqrt.pop %v130
      %v140 = vmul.f32 %v130, %v139
      %vm141 = vcmp.eq.f32.partialorder %v130, inf
      %v142 = vsel %vm141, %v130, %v140
      %vm143 = vcmp.eq.f32.partialorder %v130, 0.0
      %v144 = vand.u32 %v130, 2147483648
      %v145 = vsel %vm143, %v144, %v142
      %v146 = vrsqrt.pop %v131
      %v147 = vmul.f32 %v131, %v146
      %vm148 = vcmp.eq.f32.partialorder %v131, inf
      %v149 = vsel %vm148, %v131, %v147
      %vm150 = vcmp.eq.f32.partialorder %v131, 0.0
      %v151 = vand.u32 %v131, 2147483648
      %v152 = vsel %vm150, %v151, %v149
      %v153 = vld [vmem:[#allocation3] sm:$0xff]
      %v154 = vld [vmem:[#allocation3 + $0x8] sm:$0xff]
      %v155 = vld [vmem:[#allocation3 + $0x10] sm:$0xff]
      %v156 = vrsqrt.pop %v153
      %v157 = vmul.f32 %v153, %v156
      %vm158 = vcmp.eq.f32.partialorder %v153, inf
      %v159 = vsel %vm158, %v153, %v157
      %vm160 = vcmp.eq.f32.partialorder %v153, 0.0
      %v161 = vand.u32 %v153, 2147483648
      %v162 = vsel %vm160, %v161, %v159
      %v163 = vrsqrt.pop %v154
      %v164 = vmul.f32 %v154, %v163
      %vm165 = vcmp.eq.f32.partialorder %v154, inf
      %v166 = vsel %vm165, %v154, %v164
      %vm167 = vcmp.eq.f32.partialorder %v154, 0.0
      %v168 = vand.u32 %v154, 2147483648
      %v169 = vsel %vm167, %v168, %v166
      %v170 = vrsqrt.pop %v155
      %v171 = vmul.f32 %v155, %v170
      %vm172 = vcmp.eq.f32.partialorder %v155, inf
      %v173 = vsel %vm172, %v155, %v171
      %vm174 = vcmp.eq.f32.partialorder %v155, 0.0
      %v175 = vand.u32 %v155, 2147483648
      %v176 = vsel %vm174, %v175, %v173
      %v177 = vsub.f32 %v138, %v162
      %v178 = vsub.f32 %v145, %v169
      %v179 = vsub.f32 %v152, %v176
      %v180 = vadd.f32 %v177, 0.5
      %v181 = vadd.f32 %v178, 0.5
      %v182 = vadd.f32 %v179, 0.5
      %v183 = vmax.f32 %v180, 0.0
      %v184 = vmax.f32 %v181, 0.0
      %v185 = vmax.f32 %v182, 0.0
      %v186 = vlaneseq
      %v187 = vshrl.u32 %v186, 7
      %v188 = vadd.s32 %v187, 8
      %v189 = vadd.s32 %v187, 16
      %s190 = smul.u32 0, 24
      %v191 = vstv %s190
      %v192 = vadd.s32 %v191, %v187
      %v193 = vadd.s32 %v191, %v188
      %v194 = vadd.s32 %v191, %v189
      %vm195 = vcmp.lt.s32.totalorder %v192, 20
      %vm196 = vcmp.lt.s32.totalorder %v193, 20
      %vm197 = vcmp.lt.s32.totalorder %v194, 20
      %v198 = vsel %vm195, %v183, 0.0
      %v199 = vsel %vm196, %v184, 0.0
      %v200 = vsel %vm197, %v185, 0.0
      %v201 = vsel %vm101, %v198, 0.0
      %v202 = vsel %vm101, %v199, 0.0
      %v203 = vadd.f32 %v201, %v202
      %v204 = vsel %vm101, %v200, 0.0
      %v205 = vadd.f32 %v203, %v204
      %206 = vadd.xlane.f32.xlu0 %v205
      %v207 = vpop.xlane.xlu0 %206
      %v208 = vrot.slane %v207, 4
      %v209 = vadd.f32 %v207, %v208
      %v210 = vrot.slane %v209, 2
      %v211 = vadd.f32 %v209, %v210
      %v212 = vrot.slane %v211, 1
      %v213 = vadd.f32 %v211, %v212
      %s214 = vtos %v213
      %v215 = vstv %s214
      %216 = vst [vmem:[#allocation10] sm:$0x1] %v215
    $region33: #{tpu_custom_call.1} parent=1 // pred_fallthru
      _
    // Predicated region
    $region34: #{tpu_custom_call.1} parent=1 // pred_check
      _
    $region35: #{tpu_custom_call.1} parent=1 // pred_check_branch
      %218 = sbr.rel (0) target = $region37
    $region36: #{tpu_custom_call.1} parent=1 // pred_region
      %s220 = ssub.s32 16, 16
      %221 = vsyncadd [#allocation6], %s220
      %s223 = sshll.u32 [#allocation10], 4
      %s224 = int_to_ptr.vmem [resolvable:$true] %s223
      %226 = dma.vmem_to_hbm [thread:$0]  %s224, 16, %s3, [#allocation6]
    $region37: #{tpu_custom_call.1} parent=1 // pred_fallthru
      _
    // Predicated region
    $region38: #{tpu_custom_call.1} parent=1 // pred_check
      _
    $region39: #{tpu_custom_call.1} parent=1 // pred_check_branch
      %228 = sbr.rel (0) target = $region41
    $region40: #{tpu_custom_call.1} parent=1 // pred_region
      %229 = dma.done [#allocation6], 16
    $region41: #{tpu_custom_call.1} parent=1 // pred_fallthru
      _
    %230 = vsyncpa [#allocation5], 1
    %231 = vsyncpa [#allocation8], 1
    %232 = vsyncpa [#allocation6], 1

</llo_original>
